<compile_context>
chip_gen: v7x
topology: tpu7x:2x2x1
jax: 0.10.0
libtpu: 0.0.40
codegen_flags: <defaults>
</compile_context>

<pallas_src>
import jax
import jax.numpy as jnp
from jax import lax
from jax.experimental import pallas as pl
from jax.experimental.pallas import tpu as pltpu

DENSE_DIM = 128
NUM_OBJECTIVES = 6
OUT_ROWS = 8               # 6 real objectives + 2 inert padding rows (sublane quantum)
NEG_LARGE = -1e30          # padding-row bias: exp(NEG_LARGE - max) underflows to 0.0
MAX_TILE_BATCH = 4096      # review: sweep 1024..4096; VMEM use stays ~6 MiB at 4096


def critic_kernel(x_ref, w1_ref, wh_ref, bh_ref, w5t_ref, b5t_ref, out_ref):
    """One batch tile of the full forward pass, entirely in VMEM.

    Matmuls run on the MXU in bf16 with f32 accumulation; ReLU runs on the VPU
    in f32. The output head is computed transposed ((OUT_ROWS, TB), batch along
    lanes) and the softmax is taken over the 8 sublanes.
    """
    x = x_ref[...]  # (TB, state_dim) bf16

    def dense_relu(h, w, b):
        y = jnp.dot(h, w, preferred_element_type=jnp.float32) + b
        return jnp.maximum(y, 0.0).astype(jnp.bfloat16)

    h = dense_relu(x, w1_ref[...], bh_ref[0:1, :])            # input_layer + ReLU
    for j in range(3):                                         # hidden_1..3 + ReLU
        h = dense_relu(h, wh_ref[j], bh_ref[j + 1:j + 2, :])

    # Output head, directly transposed: logits_t[o, n] = sum_k w5t[o, k] * h[n, k]
    logits_t = lax.dot_general(
        w5t_ref[...], h,
        dimension_numbers=(((1,), (1,)), ((), ())),
        preferred_element_type=jnp.float32,
    ) + b5t_ref[...]                                           # (OUT_ROWS, TB) + (OUT_ROWS, 1)

    # Numerically stable softmax over the 8 sublanes (pad rows contribute 0).
    m = jnp.max(logits_t, axis=0, keepdims=True)               # (1, TB)
    e = jnp.exp(logits_t - m)                                  # (OUT_ROWS, TB)
    denom = jnp.sum(e, axis=0, keepdims=True)                  # (1, TB)
    out_ref[...] = e / denom


def _choose_tile_batch(batch):
    """Static (trace-time) batch-tile selection.

    Small problems run as a single tile; large ones use big tiles (amortize
    the ~0.35us/step grid overhead) while keeping >= 2 grid steps so v7x's two
    TensorCores both get work.
    """
    padded = pl.cdiv(batch, 8) * 8
    if padded <= 1024:
        return padded
    half = pl.cdiv(padded, 2)
    return min(MAX_TILE_BATCH, pl.cdiv(half, 128) * 128)


@jax.jit
def critic_forward(x, params):
    """x: (batch, state_dim) float32. params: dict of f32 weights/biases.

    Returns (batch, 6) float32 softmax probabilities.
    """
    batch, state_dim = x.shape
    tile_batch = _choose_tile_batch(batch)
    padded_batch = pl.cdiv(batch, tile_batch) * tile_batch

    # Cast / pad the activations once in the wrapper (not per grid step).
    x_bf = x.astype(jnp.bfloat16)
    if padded_batch != batch:
        x_bf = jnp.pad(x_bf, ((0, padded_batch - batch), (0, 0)))

    # --- pack parameters -------------------------------------------------
    w1 = params["w1"].astype(jnp.bfloat16)                                 # (state_dim, 128)
    wh = jnp.stack([params["w2"], params["w3"], params["w4"]]).astype(jnp.bfloat16)  # (3,128,128)

    bh = jnp.zeros((8, DENSE_DIM), jnp.float32)                            # rows 0..3 used
    bh = bh.at[0].set(params["b1"].reshape(-1).astype(jnp.float32))
    bh = bh.at[1].set(params["b2"].reshape(-1).astype(jnp.float32))
    bh = bh.at[2].set(params["b3"].reshape(-1).astype(jnp.float32))
    bh = bh.at[3].set(params["b4"].reshape(-1).astype(jnp.float32))

    # Transposed, sublane-padded head: rows 0..5 real, rows 6..7 inert
    # (zero weights + -1e30 bias -> exp() == 0 -> softmax over 6 unchanged).
    w5t = jnp.zeros((OUT_ROWS, DENSE_DIM), jnp.bfloat16)
    w5t = w5t.at[:NUM_OBJECTIVES].set(params["w5"].T.astype(jnp.bfloat16))
    b5t = jnp.full((OUT_ROWS, 1), NEG_LARGE, jnp.float32)
    b5t = b5t.at[:NUM_OBJECTIVES, 0].set(params["b5"].reshape(-1).astype(jnp.float32))

    resident2 = lambda i: (0, 0)      # weights/biases stay VMEM-resident across steps
    resident3 = lambda i: (0, 0, 0)

    out = pl.pallas_call(
        critic_kernel,
        out_shape=jax.ShapeDtypeStruct((OUT_ROWS, padded_batch), jnp.float32),
        grid=(padded_batch // tile_batch,),
        in_specs=[
            pl.BlockSpec((tile_batch, state_dim), lambda i: (i, 0)),   # x tile
            pl.BlockSpec((state_dim, DENSE_DIM), resident2),           # w1
            pl.BlockSpec((3, DENSE_DIM, DENSE_DIM), resident3),        # w2..w4 stacked
            pl.BlockSpec((8, DENSE_DIM), resident2),                   # b1..b4 packed
            pl.BlockSpec((OUT_ROWS, DENSE_DIM), resident2),            # w5^T (padded rows)
            pl.BlockSpec((OUT_ROWS, 1), resident2),                    # b5^T (padded rows)
        ],
        out_specs=pl.BlockSpec((OUT_ROWS, tile_batch), lambda i: (0, i)),
        compiler_params=pltpu.CompilerParams(
            dimension_semantics=("parallel",),
            vmem_limit_bytes=32 << 20,
        ),
    )(x_bf, w1, wh, bh, w5t, b5t)

    # Narrow (8, padded_batch) slab -> (batch, 6). Tiny compared to the old
    # (padded_batch, 128) f32 re-read.
    return out[:NUM_OBJECTIVES, :batch].T


def init_params(key, state_dim, dense_dim=DENSE_DIM, num_objectives=NUM_OBJECTIVES):
    """Deterministic init mimicking nn.Linear's U(-1/sqrt(fan_in), 1/sqrt(fan_in))."""
    def linear(k, fan_in, fan_out):
        kw, kb = jax.random.split(k)
        bound = 1.0 / jnp.sqrt(jnp.float32(fan_in))
        w = jax.random.uniform(kw, (fan_in, fan_out), jnp.float32, -bound, bound)
        b = jax.random.uniform(kb, (1, fan_out), jnp.float32, -bound, bound)
        return w, b

    keys = jax.random.split(key, 5)
    w1, b1 = linear(keys[0], state_dim, dense_dim)
    w2, b2 = linear(keys[1], dense_dim, dense_dim)
    w3, b3 = linear(keys[2], dense_dim, dense_dim)
    w4, b4 = linear(keys[3], dense_dim, dense_dim)
    w5, b5 = linear(keys[4], dense_dim, num_objectives)
    return dict(w1=w1, b1=b1, w2=w2, b2=b2, w3=w3, b3=b3,
                w4=w4, b4=b4, w5=w5, b5=b5)


def critic_reference(x, p):
    """Pure-JAX reference mirroring the kernel's bf16 matmul / f32 accumulate."""
    def dense(h, w, b):
        return jnp.dot(h.astype(jnp.bfloat16), w.astype(jnp.bfloat16),
                       preferred_element_type=jnp.float32) + b.astype(jnp.float32)

    h = jnp.maximum(dense(x, p["w1"], p["b1"]), 0.0)
    h = jnp.maximum(dense(h, p["w2"], p["b2"]), 0.0)
    h = jnp.maximum(dense(h, p["w3"], p["b3"]), 0.0)
    h = jnp.maximum(dense(h, p["w4"], p["b4"]), 0.0)
    logits = dense(h, p["w5"], p["b5"])
    return jax.nn.softmax(logits, axis=-1)


if __name__ == "__main__":
    # TODO(synk): Adam optimizer / ppo_update / sample_critic are training &
    # host-side utilities, not part of the forward pass implemented here.
    num_components = 8          # -> state_dim = 32
    state_dim = 4 * num_components
    batch = 8                   # small test batch; kernel pads/tiles internally

    key = jax.random.PRNGKey(0)
    k_x, k_p = jax.random.split(key)
    x = jax.random.normal(k_x, (batch, state_dim), dtype=jnp.float32)
    params = init_params(k_p, state_dim)

    out = critic_forward(x, params)
    out = jax.block_until_ready(out)

    ref = critic_reference(x, params)
    assert out.shape == (batch, NUM_OBJECTIVES)
    assert jnp.allclose(out, ref, atol=2e-3, rtol=2e-3), "mismatch vs reference"
    # rows of a softmax sum to 1
    assert jnp.allclose(jnp.sum(out, axis=-1), 1.0, atol=1e-3)

    print("KERNEL_OK")
</pallas_src>

<mosaic_0001>
module attributes {stable_mosaic.version = 11 : i64} {
  func.func @critic_kernel(%arg0: i32, %arg1: memref<8x32xbf16, #tpu.memory_space<vmem>>, %arg2: memref<32x128xbf16, #tpu.memory_space<vmem>>, %arg3: memref<3x128x128xbf16, #tpu.memory_space<vmem>>, %arg4: memref<8x128xf32, #tpu.memory_space<vmem>>, %arg5: memref<8x128xbf16, #tpu.memory_space<vmem>>, %arg6: memref<8x1xf32, #tpu.memory_space<vmem>>, %arg7: memref<8x8xf32, #tpu.memory_space<vmem>>) attributes {dimension_semantics = [#tpu.dimension_semantics<parallel>], iteration_bounds = array<i64: 1>, scalar_prefetch = 0 : i64, scratch_operands = 0 : i64, tpu.core_type = #tpu.core_type<tc>, window_params = [{transform_indices = @transform_0, window_bounds = array<i64: 8, 32>}, {pipeline_mode = #tpu.pipeline_mode<synchronous>, transform_indices = @transform_1, window_bounds = array<i64: 32, 128>}, {pipeline_mode = #tpu.pipeline_mode<synchronous>, transform_indices = @transform_2, window_bounds = array<i64: 3, 128, 128>}, {pipeline_mode = #tpu.pipeline_mode<synchronous>, transform_indices = @transform_3, window_bounds = array<i64: 8, 128>}, {pipeline_mode = #tpu.pipeline_mode<synchronous>, transform_indices = @transform_4, window_bounds = array<i64: 8, 128>}, {pipeline_mode = #tpu.pipeline_mode<synchronous>, transform_indices = @transform_5, window_bounds = array<i64: 8, 1>}, {transform_indices = @transform_6, window_bounds = array<i64: 8, 8>}]} {
    %c0 = arith.constant 0 : index
    %c0_0 = arith.constant 0 : index
    %0 = vector.load %arg1[%c0, %c0_0] : memref<8x32xbf16, #tpu.memory_space<vmem>>, vector<8x32xbf16>
    %c0_1 = arith.constant 0 : index
    %c0_2 = arith.constant 0 : index
    %1 = vector.load %arg2[%c0_1, %c0_2] : memref<32x128xbf16, #tpu.memory_space<vmem>>, vector<32x128xbf16>
    %c0_3 = arith.constant 0 : index
    %c0_4 = arith.constant 0 : index
    %2 = vector.load %arg4[%c0_3, %c0_4] : memref<8x128xf32, #tpu.memory_space<vmem>>, vector<1x128xf32>
    %cst = arith.constant dense<0.000000e+00> : vector<8x128xf32>
    %3 = tpu.matmul %0, %1, %cst {dimension_numbers = #tpu.dot_dimension_numbers<[1], [0], [0], [1], [0, 0, 1, 1], [], []>} : vector<8x32xbf16>, vector<32x128xbf16>, vector<8x128xf32> -> vector<8x128xf32>
    %4 = vector.broadcast %2 : vector<1x128xf32> to vector<8x128xf32>
    %5 = arith.addf %3, %4 : vector<8x128xf32>
    %cst_5 = arith.constant 0.000000e+00 : f32
    %6 = vector.broadcast %cst_5 : f32 to vector<8x128xf32>
    %7 = arith.maximumf %5, %6 : vector<8x128xf32>
    %8 = arith.truncf %7 : vector<8x128xf32> to vector<8x128xbf16>
    %c0_6 = arith.constant 0 : index
    %c0_7 = arith.constant 0 : index
    %c0_8 = arith.constant 0 : index
    %9 = vector.load %arg3[%c0_6, %c0_7, %c0_8] : memref<3x128x128xbf16, #tpu.memory_space<vmem>>, vector<1x128x128xbf16>
    %10 = vector.shape_cast %9 : vector<1x128x128xbf16> to vector<128x128xbf16>
    %c1 = arith.constant 1 : index
    %c0_9 = arith.constant 0 : index
    %11 = vector.load %arg4[%c1, %c0_9] : memref<8x128xf32, #tpu.memory_space<vmem>>, vector<1x128xf32>
    %cst_10 = arith.constant dense<0.000000e+00> : vector<8x128xf32>
    %12 = tpu.matmul %8, %10, %cst_10 {dimension_numbers = #tpu.dot_dimension_numbers<[1], [0], [0], [1], [0, 0, 1, 1], [], []>} : vector<8x128xbf16>, vector<128x128xbf16>, vector<8x128xf32> -> vector<8x128xf32>
    %13 = vector.broadcast %11 : vector<1x128xf32> to vector<8x128xf32>
    %14 = arith.addf %12, %13 : vector<8x128xf32>
    %cst_11 = arith.constant 0.000000e+00 : f32
    %15 = vector.broadcast %cst_11 : f32 to vector<8x128xf32>
    %16 = arith.maximumf %14, %15 : vector<8x128xf32>
    %17 = arith.truncf %16 : vector<8x128xf32> to vector<8x128xbf16>
    %c1_12 = arith.constant 1 : index
    %c0_13 = arith.constant 0 : index
    %c0_14 = arith.constant 0 : index
    %18 = vector.load %arg3[%c1_12, %c0_13, %c0_14] : memref<3x128x128xbf16, #tpu.memory_space<vmem>>, vector<1x128x128xbf16>
    %19 = vector.shape_cast %18 : vector<1x128x128xbf16> to vector<128x128xbf16>
    %c2 = arith.constant 2 : index
    %c0_15 = arith.constant 0 : index
    %20 = vector.load %arg4[%c2, %c0_15] : memref<8x128xf32, #tpu.memory_space<vmem>>, vector<1x128xf32>
    %cst_16 = arith.constant dense<0.000000e+00> : vector<8x128xf32>
    %21 = tpu.matmul %17, %19, %cst_16 {dimension_numbers = #tpu.dot_dimension_numbers<[1], [0], [0], [1], [0, 0, 1, 1], [], []>} : vector<8x128xbf16>, vector<128x128xbf16>, vector<8x128xf32> -> vector<8x128xf32>
    %22 = vector.broadcast %20 : vector<1x128xf32> to vector<8x128xf32>
    %23 = arith.addf %21, %22 : vector<8x128xf32>
    %cst_17 = arith.constant 0.000000e+00 : f32
    %24 = vector.broadcast %cst_17 : f32 to vector<8x128xf32>
    %25 = arith.maximumf %23, %24 : vector<8x128xf32>
    %26 = arith.truncf %25 : vector<8x128xf32> to vector<8x128xbf16>
    %c2_18 = arith.constant 2 : index
    %c0_19 = arith.constant 0 : index
    %c0_20 = arith.constant 0 : index
    %27 = vector.load %arg3[%c2_18, %c0_19, %c0_20] : memref<3x128x128xbf16, #tpu.memory_space<vmem>>, vector<1x128x128xbf16>
    %28 = vector.shape_cast %27 : vector<1x128x128xbf16> to vector<128x128xbf16>
    %c3 = arith.constant 3 : index
    %c0_21 = arith.constant 0 : index
    %29 = vector.load %arg4[%c3, %c0_21] : memref<8x128xf32, #tpu.memory_space<vmem>>, vector<1x128xf32>
    %cst_22 = arith.constant dense<0.000000e+00> : vector<8x128xf32>
    %30 = tpu.matmul %26, %28, %cst_22 {dimension_numbers = #tpu.dot_dimension_numbers<[1], [0], [0], [1], [0, 0, 1, 1], [], []>} : vector<8x128xbf16>, vector<128x128xbf16>, vector<8x128xf32> -> vector<8x128xf32>
    %31 = vector.broadcast %29 : vector<1x128xf32> to vector<8x128xf32>
    %32 = arith.addf %30, %31 : vector<8x128xf32>
    %cst_23 = arith.constant 0.000000e+00 : f32
    %33 = vector.broadcast %cst_23 : f32 to vector<8x128xf32>
    %34 = arith.maximumf %32, %33 : vector<8x128xf32>
    %35 = arith.truncf %34 : vector<8x128xf32> to vector<8x128xbf16>
    %c0_24 = arith.constant 0 : index
    %c0_25 = arith.constant 0 : index
    %36 = vector.load %arg5[%c0_24, %c0_25] : memref<8x128xbf16, #tpu.memory_space<vmem>>, vector<8x128xbf16>
    %cst_26 = arith.constant dense<0.000000e+00> : vector<8x8xf32>
    %37 = tpu.matmul %36, %35, %cst_26 {dimension_numbers = #tpu.dot_dimension_numbers<[1], [1], [0], [0], [0, 0, 1, 0], [], []>} : vector<8x128xbf16>, vector<8x128xbf16>, vector<8x8xf32> -> vector<8x8xf32>
    %c0_27 = arith.constant 0 : index
    %c0_28 = arith.constant 0 : index
    %38 = vector.load %arg6[%c0_27, %c0_28] : memref<8x1xf32, #tpu.memory_space<vmem>>, vector<8x1xf32>
    %39 = vector.broadcast %38 : vector<8x1xf32> to vector<8x8xf32>
    %40 = arith.addf %37, %39 : vector<8x8xf32>
    %cst_29 = arith.constant dense<0xFF800000> : vector<8xf32>
    %41 = vector.multi_reduction <maximumf>, %40, %cst_29 [0] : vector<8x8xf32> to vector<8xf32>
    %42 = vector.shape_cast %41 : vector<8xf32> to vector<1x8xf32>
    %43 = vector.broadcast %42 : vector<1x8xf32> to vector<8x8xf32>
    %44 = arith.subf %40, %43 : vector<8x8xf32>
    %45 = math.exp %44 : vector<8x8xf32>
    %cst_30 = arith.constant dense<0.000000e+00> : vector<8xf32>
    %46 = vector.multi_reduction <add>, %45, %cst_30 [0] : vector<8x8xf32> to vector<8xf32>
    %47 = vector.shape_cast %46 : vector<8xf32> to vector<1x8xf32>
    %48 = vector.broadcast %47 : vector<1x8xf32> to vector<8x8xf32>
    %49 = arith.divf %45, %48 : vector<8x8xf32>
    %c0_31 = arith.constant 0 : index
    %c0_32 = arith.constant 0 : index
    %50 = vector.load %arg7[%c0_31, %c0_32] : memref<8x8xf32, #tpu.memory_space<vmem>>, vector<8x8xf32>
    tpu.vector_store %arg7[%c0_31, %c0_32], %49 {strides = array<i32>} : memref<8x8xf32, #tpu.memory_space<vmem>>, vector<8x8xf32>,
    return
  }
  func.func @transform_0(%arg0: i32) -> (i32, i32) {
    %c0_i32 = arith.constant 0 : i32
    %c0_i32_0 = arith.constant 0 : i32
    return %arg0, %c0_i32 : i32, i32
  }
  func.func @transform_1(%arg0: i32) -> (i32, i32) {
    %c0_i32 = arith.constant 0 : i32
    %c0_i32_0 = arith.constant 0 : i32
    %c0_i32_1 = arith.constant 0 : i32
    return %c0_i32, %c0_i32_0 : i32, i32
  }
  func.func @transform_2(%arg0: i32) -> (i32, i32, i32) {
    %c0_i32 = arith.constant 0 : i32
    %c0_i32_0 = arith.constant 0 : i32
    %c0_i32_1 = arith.constant 0 : i32
    %c0_i32_2 = arith.constant 0 : i32
    return %c0_i32, %c0_i32_0, %c0_i32_1 : i32, i32, i32
  }
  func.func @transform_3(%arg0: i32) -> (i32, i32) {
    %c0_i32 = arith.constant 0 : i32
    %c0_i32_0 = arith.constant 0 : i32
    %c0_i32_1 = arith.constant 0 : i32
    return %c0_i32, %c0_i32_0 : i32, i32
  }
  func.func @transform_4(%arg0: i32) -> (i32, i32) {
    %c0_i32 = arith.constant 0 : i32
    %c0_i32_0 = arith.constant 0 : i32
    %c0_i32_1 = arith.constant 0 : i32
    return %c0_i32, %c0_i32_0 : i32, i32
  }
  func.func @transform_5(%arg0: i32) -> (i32, i32) {
    %c0_i32 = arith.constant 0 : i32
    %c0_i32_0 = arith.constant 0 : i32
    %c0_i32_1 = arith.constant 0 : i32
    return %c0_i32, %c0_i32_0 : i32, i32
  }
  func.func @transform_6(%arg0: i32) -> (i32, i32) {
    %c0_i32 = arith.constant 0 : i32
    %c0_i32_0 = arith.constant 0 : i32
    return %c0_i32, %arg0 : i32, i32
  }
}

</mosaic_0001>

<llo_original>
// kernel: critic_forward.1
$region0: #{critic_forward.1}
  #allocation0 [shape = 'u32[]', space=smem, size = 0x4, offset = 0x4, fixed_abs, tag = 'smem constant byte address 0x4 - core index']
  #allocation1 [shape = 'u32[144,128]{1,0:T(1,128)}', space=vmem, size = 0x12000, scoped, tag = 'internal scratch']
  %s0 = inlined_call_operand.vmem [shape: bf16[8,32], index: 0, kind: input, shape index: {}]
  %s1 = inlined_call_operand.vmem [shape: bf16[32,128], index: 1, kind: input, shape index: {}]
  %s2 = inlined_call_operand.vmem [shape: bf16[3,128,128], index: 2, kind: input, shape index: {}]
  %s3 = inlined_call_operand.vmem [shape: f32[8,128], index: 3, kind: input, shape index: {}]
  %s4 = inlined_call_operand.vmem [shape: bf16[8,128], index: 4, kind: input, shape index: {}]
  %s5 = inlined_call_operand.vmem [shape: f32[8,1], index: 5, kind: input, shape index: {}]
  %s6 = inlined_call_operand.vmem [shape: f32[8,8], index: 6, kind: output, shape index: {}]
  %s7 = sld [smem:[#allocation0]]
  $region34: #{critic_forward.1} parent=0
    _
  %s9 = ssub.s32 1, %s7
  %s10 = scalar_select 0, %s9, %s7
  // Predicated region
  $region2: #{critic_forward.1} parent=0 // pred_check
    _
  $region3: #{critic_forward.1} parent=0 // pred_check_branch
    %12 = sbr.rel (0) target = $region5
  $region4: #{critic_forward.1} parent=0 // pred_region
    _
  $region5: #{critic_forward.1} parent=0 // pred_fallthru
    _
  // Predicated region
  $region6: #{critic_forward.1} parent=0 // pred_check
    _
  $region7: #{critic_forward.1} parent=0 // pred_check_branch
    %14 = sbr.rel (0) target = $region9
  $region8: #{critic_forward.1} parent=0 // pred_region
    _
  $region9: #{critic_forward.1} parent=0 // pred_fallthru
    _
  // Predicated region
  $region10: #{critic_forward.1} parent=0 // pred_check
    _
  $region11: #{critic_forward.1} parent=0 // pred_check_branch
    %16 = sbr.rel (0) target = $region13
  $region12: #{critic_forward.1} parent=0 // pred_region
    _
  $region13: #{critic_forward.1} parent=0 // pred_fallthru
    _
  // Predicated region
  $region14: #{critic_forward.1} parent=0 // pred_check
    _
  $region15: #{critic_forward.1} parent=0 // pred_check_branch
    %18 = sbr.rel (0) target = $region17
  $region16: #{critic_forward.1} parent=0 // pred_region
    _
  $region17: #{critic_forward.1} parent=0 // pred_fallthru
    _
  // Predicated region
  $region18: #{critic_forward.1} parent=0 // pred_check
    _
  $region19: #{critic_forward.1} parent=0 // pred_check_branch
    %20 = sbr.rel (0) target = $region21
  $region20: #{critic_forward.1} parent=0 // pred_region
    _
  $region21: #{critic_forward.1} parent=0 // pred_fallthru
    _
  // Predicated region
  $region22: #{critic_forward.1} parent=0 // pred_check
    _
  $region23: #{critic_forward.1} parent=0 // pred_check_branch
    %22 = sbr.rel (0) target = $region25
  $region24: #{critic_forward.1} parent=0 // pred_region
    _
  $region25: #{critic_forward.1} parent=0 // pred_fallthru
    _
  %v24 = vld [vmem:[%s0] sm:$0xf]
  %v25 = vld [vmem:[%s1] sm:$0xf]
  %v26 = vld [vmem:[%s1 + $0x4] sm:$0xf]
  %v27 = vld [vmem:[%s1 + $0x8] sm:$0xf]
  %v28 = vld [vmem:[%s1 + $0xc] sm:$0xf]
  %v29 = vld [vmem:[%s3] sm:$0x1]
  %v30 = vlaneseq
  %v31 = vshrl.u32 %v30, 7
  %v32 = vsub.s32 0, %v31
  %v33 = vrot.slane %v29, %v32
  %v38 = vunpack.c.l.b16 %v25
  %v39 = vunpack.c.l.b16 %v26
  %v40 = vunpack.c.l.b16 %v27
  %v41 = vunpack.c.l.b16 %v28
  %v42 = vpack.c.b16 %v39, %v38
  %v43 = vpack.c.b16 %v41, %v40
  %vm46 = vcmask 261120
  %v48 = vsel %vm46, %v24, 0
  %50 = vmatprep.subr.bf16.mxu0 0
  %51 = vmatpush1.bf16.msra.mxu0 %v42
  %52 = vmatprep.subr.bf16.mxu0 0
  %53 = vmatpush1.bf16.msra.mxu0 %v43
  %54 = vmatprep.subr.bf16.mxu0 0
  %55 = vmatpush1.bf16.msra.mxu0 0
  %56 = vmatprep.subr.bf16.mxu0 0
  %57 = vmatpush1.bf16.msra.mxu0 0
  %58 = vmatprep.subr.bf16.mxu0 0
  %59 = vmatpush1.bf16.msra.mxu0 0
  %60 = vmatprep.subr.bf16.mxu0 0
  %61 = vmatpush1.bf16.msra.mxu0 0
  %62 = vmatprep.subr.bf16.mxu0 0
  %63 = vmatpush1.bf16.msra.mxu0 0
  %64 = vmatprep.subr.bf16.mxu0 0
  %65 = vmatpush1.bf16.msra.mxu0 0
  %66 = vmatprep.subr.bf16.mxu0 0
  %67 = vmatpush1.bf16.msra.mxu0 0
  %68 = vmatprep.subr.bf16.mxu0 0
  %69 = vmatpush1.bf16.msra.mxu0 0
  %70 = vmatprep.subr.bf16.mxu0 0
  %71 = vmatpush1.bf16.msra.mxu0 0
  %72 = vmatprep.subr.bf16.mxu0 0
  %73 = vmatpush1.bf16.msra.mxu0 0
  %74 = vmatprep.subr.bf16.mxu0 0
  %75 = vmatpush1.bf16.msra.mxu0 0
  %76 = vmatprep.subr.bf16.mxu0 0
  %77 = vmatpush1.bf16.msra.mxu0 0
  %78 = vmatprep.subr.bf16.mxu0 0
  %79 = vmatpush1.bf16.msra.mxu0 0
  %80 = vmatprep.subr.bf16.mxu0 0
  %81 = vmatpush1.bf16.msra.mxu0 0
  %82 = vmatprep.mubr.bf16.mxu0 0
  %83 = vmatmul.mubr.bf16.gmra.mrb[0].mxu0 %v48
  %v84 = vpop.f32.mrb[0].mxu0
  %v85 = vadd.f32 %v33, %v84
  %v86 = vpop.f32.mrb[0].mxu0
  %v87 = vpop.f32.mrb[0].mxu0
  %v88 = vpop.f32.mrb[0].mxu0
  %89 = vdwg.mxu0
  %v90 = vmax.f32 %v85, 0.0
  %v91 = vpack.c.bf16 %v90, %v90
  %v92 = vld [vmem:[%s2] sm:$0xf]
  %v93 = vld [vmem:[%s2 + $0x4] sm:$0xf]
  %v94 = vld [vmem:[%s2 + $0x8] sm:$0xf]
  %v95 = vld [vmem:[%s2 + $0xc] sm:$0xf]
  %v96 = vld [vmem:[%s2 + $0x10] sm:$0xf]
  %v97 = vld [vmem:[%s2 + $0x14] sm:$0xf]
  %v98 = vld [vmem:[%s2 + $0x18] sm:$0xf]
  %v99 = vld [vmem:[%s2 + $0x1c] sm:$0xf]
  %v100 = vld [vmem:[%s2 + $0x20] sm:$0xf]
  %v101 = vld [vmem:[%s2 + $0x24] sm:$0xf]
  %v102 = vld [vmem:[%s2 + $0x28] sm:$0xf]
  %v103 = vld [vmem:[%s2 + $0x2c] sm:$0xf]
  %v104 = vld [vmem:[%s2 + $0x30] sm:$0xf]
  %v105 = vld [vmem:[%s2 + $0x34] sm:$0xf]
  %v106 = vld [vmem:[%s2 + $0x38] sm:$0xf]
  %v107 = vld [vmem:[%s2 + $0x3c] sm:$0xf]
  %v108 = vld [vmem:[%s3 + $0x1] sm:$0x1]
  %v109 = vlaneseq
  %v110 = vshrl.u32 %v109, 7
  %v111 = vsub.s32 0, %v110
  %v112 = vrot.slane %v108, %v111
  %v129 = vunpack.c.l.b16 %v92
  %v130 = vunpack.c.l.b16 %v93
  %v131 = vunpack.c.l.b16 %v94
  %v132 = vunpack.c.l.b16 %v95
  %v133 = vunpack.c.l.b16 %v96
  %v134 = vunpack.c.l.b16 %v97
  %v135 = vunpack.c.l.b16 %v98
  %v136 = vunpack.c.l.b16 %v99
  %v137 = vunpack.c.l.b16 %v100
  %v138 = vunpack.c.l.b16 %v101
  %v139 = vunpack.c.l.b16 %v102
  %v140 = vunpack.c.l.b16 %v103
  %v141 = vunpack.c.l.b16 %v104
  %v142 = vunpack.c.l.b16 %v105
  %v143 = vunpack.c.l.b16 %v106
  %v144 = vunpack.c.l.b16 %v107
  %v145 = vpack.c.b16 %v130, %v129
  %v146 = vpack.c.b16 %v132, %v131
  %v147 = vpack.c.b16 %v134, %v133
  %v148 = vpack.c.b16 %v136, %v135
  %v149 = vpack.c.b16 %v138, %v137
  %v150 = vpack.c.b16 %v140, %v139
  %v151 = vpack.c.b16 %v142, %v141
  %v152 = vpack.c.b16 %v144, %v143
  %161 = vmatprep.subr.bf16.mxu0 0
  %162 = vmatpush1.bf16.msra.mxu0 %v145
  %163 = vmatprep.subr.bf16.mxu0 0
  %164 = vmatpush1.bf16.msra.mxu0 %v146
  %165 = vmatprep.subr.bf16.mxu0 0
  %166 = vmatpush1.bf16.msra.mxu0 %v147
  %167 = vmatprep.subr.bf16.mxu0 0
  %168 = vmatpush1.bf16.msra.mxu0 %v148
  %169 = vmatprep.subr.bf16.mxu0 0
  %170 = vmatpush1.bf16.msra.mxu0 %v149
  %171 = vmatprep.subr.bf16.mxu0 0
  %172 = vmatpush1.bf16.msra.mxu0 %v150
  %173 = vmatprep.subr.bf16.mxu0 0
  %174 = vmatpush1.bf16.msra.mxu0 %v151
  %175 = vmatprep.subr.bf16.mxu0 0
  %176 = vmatpush1.bf16.msra.mxu0 %v152
  %177 = vmatprep.subr.bf16.mxu0 0
  %178 = vmatpush1.bf16.msra.mxu0 0
  %179 = vmatprep.subr.bf16.mxu0 0
  %180 = vmatpush1.bf16.msra.mxu0 0
  %181 = vmatprep.subr.bf16.mxu0 0
  %182 = vmatpush1.bf16.msra.mxu0 0
  %183 = vmatprep.subr.bf16.mxu0 0
  %184 = vmatpush1.bf16.msra.mxu0 0
  %185 = vmatprep.subr.bf16.mxu0 0
  %186 = vmatpush1.bf16.msra.mxu0 0
  %187 = vmatprep.subr.bf16.mxu0 0
  %188 = vmatpush1.bf16.msra.mxu0 0
  %189 = vmatprep.subr.bf16.mxu0 0
  %190 = vmatpush1.bf16.msra.mxu0 0
  %191 = vmatprep.subr.bf16.mxu0 0
  %192 = vmatpush1.bf16.msra.mxu0 0
  %193 = vmatprep.mubr.bf16.mxu0 0
  %194 = vmatmul.mubr.bf16.gmra.mrb[0].mxu0 %v91
  %v195 = vpop.f32.mrb[0].mxu0
  %v196 = vadd.f32 %v112, %v195
  %v197 = vpop.f32.mrb[0].mxu0
  %v198 = vpop.f32.mrb[0].mxu0
  %v199 = vpop.f32.mrb[0].mxu0
  %200 = vdwg.mxu0
  %v201 = vmax.f32 %v196, 0.0
  %v202 = vpack.c.bf16 %v201, %v201
  %s203 = scalar_lea.vmem %s2, 64
  %v204 = vld [vmem:[%s203] sm:$0xf]
  %v205 = vld [vmem:[%s203 + $0x4] sm:$0xf]
  %v206 = vld [vmem:[%s203 + $0x8] sm:$0xf]
  %v207 = vld [vmem:[%s203 + $0xc] sm:$0xf]
  %v208 = vld [vmem:[%s203 + $0x10] sm:$0xf]
  %v209 = vld [vmem:[%s203 + $0x14] sm:$0xf]
  %v210 = vld [vmem:[%s203 + $0x18] sm:$0xf]
  %v211 = vld [vmem:[%s203 + $0x1c] sm:$0xf]
  %v212 = vld [vmem:[%s203 + $0x20] sm:$0xf]
  %v213 = vld [vmem:[%s203 + $0x24] sm:$0xf]
  %v214 = vld [vmem:[%s203 + $0x28] sm:$0xf]
  %v215 = vld [vmem:[%s203 + $0x2c] sm:$0xf]
  %v216 = vld [vmem:[%s203 + $0x30] sm:$0xf]
  %v217 = vld [vmem:[%s203 + $0x34] sm:$0xf]
  %v218 = vld [vmem:[%s203 + $0x38] sm:$0xf]
  %v219 = vld [vmem:[%s203 + $0x3c] sm:$0xf]
  %v220 = vld [vmem:[%s3 + $0x2] sm:$0x1]
  %v221 = vlaneseq
  %v222 = vshrl.u32 %v221, 7
  %v223 = vsub.s32 0, %v222
  %v224 = vrot.slane %v220, %v223
  %v241 = vunpack.c.l.b16 %v204
  %v242 = vunpack.c.l.b16 %v205
  %v243 = vunpack.c.l.b16 %v206
  %v244 = vunpack.c.l.b16 %v207
  %v245 = vunpack.c.l.b16 %v208
  %v246 = vunpack.c.l.b16 %v209
  %v247 = vunpack.c.l.b16 %v210
  %v248 = vunpack.c.l.b16 %v211
  %v249 = vunpack.c.l.b16 %v212
  %v250 = vunpack.c.l.b16 %v213
  %v251 = vunpack.c.l.b16 %v214
  %v252 = vunpack.c.l.b16 %v215
  %v253 = vunpack.c.l.b16 %v216
  %v254 = vunpack.c.l.b16 %v217
  %v255 = vunpack.c.l.b16 %v218
  %v256 = vunpack.c.l.b16 %v219
  %v257 = vpack.c.b16 %v242, %v241
  %v258 = vpack.c.b16 %v244, %v243
  %v259 = vpack.c.b16 %v246, %v245
  %v260 = vpack.c.b16 %v248, %v247
  %v261 = vpack.c.b16 %v250, %v249
  %v262 = vpack.c.b16 %v252, %v251
  %v263 = vpack.c.b16 %v254, %v253
  %v264 = vpack.c.b16 %v256, %v255
  %273 = vmatprep.subr.bf16.mxu0 0
  %274 = vmatpush1.bf16.msra.mxu0 %v257
  %275 = vmatprep.subr.bf16.mxu0 0
  %276 = vmatpush1.bf16.msra.mxu0 %v258
  %277 = vmatprep.subr.bf16.mxu0 0
  %278 = vmatpush1.bf16.msra.mxu0 %v259
  %279 = vmatprep.subr.bf16.mxu0 0
  %280 = vmatpush1.bf16.msra.mxu0 %v260
  %281 = vmatprep.subr.bf16.mxu0 0
  %282 = vmatpush1.bf16.msra.mxu0 %v261
  %283 = vmatprep.subr.bf16.mxu0 0
  %284 = vmatpush1.bf16.msra.mxu0 %v262
  %285 = vmatprep.subr.bf16.mxu0 0
  %286 = vmatpush1.bf16.msra.mxu0 %v263
  %287 = vmatprep.subr.bf16.mxu0 0
  %288 = vmatpush1.bf16.msra.mxu0 %v264
  %289 = vmatprep.subr.bf16.mxu0 0
  %290 = vmatpush1.bf16.msra.mxu0 0
  %291 = vmatprep.subr.bf16.mxu0 0
  %292 = vmatpush1.bf16.msra.mxu0 0
  %293 = vmatprep.subr.bf16.mxu0 0
  %294 = vmatpush1.bf16.msra.mxu0 0
  %295 = vmatprep.subr.bf16.mxu0 0
  %296 = vmatpush1.bf16.msra.mxu0 0
  %297 = vmatprep.subr.bf16.mxu0 0
  %298 = vmatpush1.bf16.msra.mxu0 0
  %299 = vmatprep.subr.bf16.mxu0 0
  %300 = vmatpush1.bf16.msra.mxu0 0
  %301 = vmatprep.subr.bf16.mxu0 0
  %302 = vmatpush1.bf16.msra.mxu0 0
  %303 = vmatprep.subr.bf16.mxu0 0
  %304 = vmatpush1.bf16.msra.mxu0 0
  %305 = vmatprep.mubr.bf16.mxu0 0
  %306 = vmatmul.mubr.bf16.gmra.mrb[0].mxu0 %v202
  %v307 = vpop.f32.mrb[0].mxu0
  %v308 = vadd.f32 %v224, %v307
  %v309 = vpop.f32.mrb[0].mxu0
  %v310 = vpop.f32.mrb[0].mxu0
  %v311 = vpop.f32.mrb[0].mxu0
  %312 = vdwg.mxu0
  %v313 = vmax.f32 %v308, 0.0
  %v314 = vpack.c.bf16 %v313, %v313
  %s315 = scalar_lea.vmem %s2, 128
  %v316 = vld [vmem:[%s315] sm:$0xf]
  %v317 = vld [vmem:[%s315 + $0x4] sm:$0xf]
  %v318 = vld [vmem:[%s315 + $0x8] sm:$0xf]
  %v319 = vld [vmem:[%s315 + $0xc] sm:$0xf]
  %v320 = vld [vmem:[%s315 + $0x10] sm:$0xf]
  %v321 = vld [vmem:[%s315 + $0x14] sm:$0xf]
  %v322 = vld [vmem:[%s315 + $0x18] sm:$0xf]
  %v323 = vld [vmem:[%s315 + $0x1c] sm:$0xf]
  %v324 = vld [vmem:[%s315 + $0x20] sm:$0xf]
  %v325 = vld [vmem:[%s315 + $0x24] sm:$0xf]
  %v326 = vld [vmem:[%s315 + $0x28] sm:$0xf]
  %v327 = vld [vmem:[%s315 + $0x2c] sm:$0xf]
  %v328 = vld [vmem:[%s315 + $0x30] sm:$0xf]
  %v329 = vld [vmem:[%s315 + $0x34] sm:$0xf]
  %v330 = vld [vmem:[%s315 + $0x38] sm:$0xf]
  %v331 = vld [vmem:[%s315 + $0x3c] sm:$0xf]
  %v332 = vld [vmem:[%s3 + $0x3] sm:$0x1]
  %v333 = vlaneseq
  %v334 = vshrl.u32 %v333, 7
  %v335 = vsub.s32 0, %v334
  %v336 = vrot.slane %v332, %v335
  %v353 = vunpack.c.l.b16 %v316
  %v354 = vunpack.c.l.b16 %v317
  %v355 = vunpack.c.l.b16 %v318
  %v356 = vunpack.c.l.b16 %v319
  %v357 = vunpack.c.l.b16 %v320
  %v358 = vunpack.c.l.b16 %v321
  %v359 = vunpack.c.l.b16 %v322
  %v360 = vunpack.c.l.b16 %v323
  %v361 = vunpack.c.l.b16 %v324
  %v362 = vunpack.c.l.b16 %v325
  %v363 = vunpack.c.l.b16 %v326
  %v364 = vunpack.c.l.b16 %v327
  %v365 = vunpack.c.l.b16 %v328
  %v366 = vunpack.c.l.b16 %v329
  %v367 = vunpack.c.l.b16 %v330
  %v368 = vunpack.c.l.b16 %v331
  %v369 = vpack.c.b16 %v354, %v353
  %v370 = vpack.c.b16 %v356, %v355
  %v371 = vpack.c.b16 %v358, %v357
  %v372 = vpack.c.b16 %v360, %v359
  %v373 = vpack.c.b16 %v362, %v361
  %v374 = vpack.c.b16 %v364, %v363
  %v375 = vpack.c.b16 %v366, %v365
  %v376 = vpack.c.b16 %v368, %v367
  %385 = vmatprep.subr.bf16.mxu0 0
  %386 = vmatpush1.bf16.msra.mxu0 %v369
  %387 = vmatprep.subr.bf16.mxu0 0
  %388 = vmatpush1.bf16.msra.mxu0 %v370
  %389 = vmatprep.subr.bf16.mxu0 0
  %390 = vmatpush1.bf16.msra.mxu0 %v371
  %391 = vmatprep.subr.bf16.mxu0 0
  %392 = vmatpush1.bf16.msra.mxu0 %v372
  %393 = vmatprep.subr.bf16.mxu0 0
  %394 = vmatpush1.bf16.msra.mxu0 %v373
  %395 = vmatprep.subr.bf16.mxu0 0
  %396 = vmatpush1.bf16.msra.mxu0 %v374
  %397 = vmatprep.subr.bf16.mxu0 0
  %398 = vmatpush1.bf16.msra.mxu0 %v375
  %399 = vmatprep.subr.bf16.mxu0 0
  %400 = vmatpush1.bf16.msra.mxu0 %v376
  %401 = vmatprep.subr.bf16.mxu0 0
  %402 = vmatpush1.bf16.msra.mxu0 0
  %403 = vmatprep.subr.bf16.mxu0 0
  %404 = vmatpush1.bf16.msra.mxu0 0
  %405 = vmatprep.subr.bf16.mxu0 0
  %406 = vmatpush1.bf16.msra.mxu0 0
  %407 = vmatprep.subr.bf16.mxu0 0
  %408 = vmatpush1.bf16.msra.mxu0 0
  %409 = vmatprep.subr.bf16.mxu0 0
  %410 = vmatpush1.bf16.msra.mxu0 0
  %411 = vmatprep.subr.bf16.mxu0 0
  %412 = vmatpush1.bf16.msra.mxu0 0
  %413 = vmatprep.subr.bf16.mxu0 0
  %414 = vmatpush1.bf16.msra.mxu0 0
  %415 = vmatprep.subr.bf16.mxu0 0
  %416 = vmatpush1.bf16.msra.mxu0 0
  %417 = vmatprep.mubr.bf16.mxu0 0
  %418 = vmatmul.mubr.bf16.gmra.mrb[0].mxu0 %v314
  %v419 = vpop.f32.mrb[0].mxu0
  %v420 = vadd.f32 %v336, %v419
  %v421 = vpop.f32.mrb[0].mxu0
  %v422 = vpop.f32.mrb[0].mxu0
  %v423 = vpop.f32.mrb[0].mxu0
  %424 = vdwg.mxu0
  %v425 = vmax.f32 %v420, 0.0
  %v426 = vpack.c.bf16 %v425, %v425
  %v427 = vld [vmem:[%s4] sm:$0xf]
  %v428 = vld [vmem:[%s5] sm:$0xff]
  %430 = vset.pattern.permute.xlu0 0
  %431 = vperm.xlu0 %430, %v428
  %v432 = vpop.permute.xlu0 %431
  %434 = vmatprep.subr.bf16.mxu0 0
  %435 = vmatpush1.bf16.xpose.msra.mxu0 %v426
  %436 = vmatprep.subr.bf16.mxu0 0
  %437 = vmatpush1.bf16.xpose.msra.mxu0 0
  %438 = vmatprep.subr.bf16.mxu0 0
  %439 = vmatpush1.bf16.xpose.msra.mxu0 0
  %440 = vmatprep.subr.bf16.mxu0 0
  %441 = vmatpush1.bf16.xpose.msra.mxu0 0
  %442 = vmatprep.subr.bf16.mxu0 0
  %443 = vmatpush1.bf16.xpose.msra.mxu0 0
  %444 = vmatprep.subr.bf16.mxu0 0
  %445 = vmatpush1.bf16.xpose.msra.mxu0 0
  %446 = vmatprep.subr.bf16.mxu0 0
  %447 = vmatpush1.bf16.xpose.msra.mxu0 0
  %448 = vmatprep.subr.bf16.mxu0 0
  %449 = vmatpush1.bf16.xpose.msra.mxu0 0
  %450 = vmatprep.subr.bf16.mxu0 0
  %451 = vmatpush1.bf16.xpose.msra.mxu0 0
  %452 = vmatprep.subr.bf16.mxu0 0
  %453 = vmatpush1.bf16.xpose.msra.mxu0 0
  %454 = vmatprep.subr.bf16.mxu0 0
  %455 = vmatpush1.bf16.xpose.msra.mxu0 0
  %456 = vmatprep.subr.bf16.mxu0 0
  %457 = vmatpush1.bf16.xpose.msra.mxu0 0
  %458 = vmatprep.subr.bf16.mxu0 0
  %459 = vmatpush1.bf16.xpose.msra.mxu0 0
  %460 = vmatprep.subr.bf16.mxu0 0
  %461 = vmatpush1.bf16.xpose.msra.mxu0 0
  %462 = vmatprep.subr.bf16.mxu0 0
  %463 = vmatpush1.bf16.xpose.msra.mxu0 0
  %464 = vmatprep.subr.bf16.mxu0 0
  %465 = vmatpush1.bf16.xpose.msra.mxu0 0
  %466 = vmatprep.mubr.bf16.mxu0 0
  %467 = vmatmul.mubr.bf16.gmra.mrb[0].mxu0 %v427
  %v468 = vpop.f32.mrb[0].mxu0
  %v469 = vadd.f32 %v432, %v468
  %v470 = vpop.f32.mrb[0].mxu0
  %v471 = vpop.f32.mrb[0].mxu0
  %v472 = vpop.f32.mrb[0].mxu0
  %473 = vdwg.mxu0
  %vm474 = vcmask 64512
  %v475 = vsel %vm474, %v469, -inf
  %v476 = vrot.slane %v475, 4
  %v477 = vmax.f32 %v475, %v476
  %v478 = vrot.slane %v477, 2
  %v479 = vmax.f32 %v477, %v478
  %v480 = vrot.slane %v479, 1
  %v481 = vmax.f32 %v479, %v480
  %v482 = vsub.f32 %v469, %v481
  %v483 = vmul.f32 %v482, 1.442695
  %v484 = vpow.pop %v483
  %v485 = vsel %vm474, %v484, 0.0
  %v486 = vrot.slane %v485, 4
  %v487 = vadd.f32 %v485, %v486
  %v488 = vrot.slane %v487, 2
  %v489 = vadd.f32 %v487, %v488
  %v490 = vrot.slane %v489, 1
  %v491 = vadd.f32 %v489, %v490
  %v492 = vrcp.pop %v491
  %v493 = vmul.f32 %v484, %v492
  %494 = vst.msk [vmem:[%s6] sm:$0xff] %vm474, %v493
  // Predicated region
  $region26: #{critic_forward.1} parent=0 // pred_check
    _
  $region27: #{critic_forward.1} parent=0 // pred_check_branch
    %496 = sbr.rel (0) target = $region29
  $region28: #{critic_forward.1} parent=0 // pred_region
    _
  $region29: #{critic_forward.1} parent=0 // pred_fallthru
    _
  // Predicated region
  $region30: #{critic_forward.1} parent=0 // pred_check
    _
  $region31: #{critic_forward.1} parent=0 // pred_check_branch
    %498 = sbr.rel (0) target = $region33
  $region32: #{critic_forward.1} parent=0 // pred_region
    _
  $region33: #{critic_forward.1} parent=0 // pred_fallthru
    _

</llo_original>
